<compile_context>
chip_gen: v6e
topology: v6e:2x2x1
jax: 0.10.0
libtpu: 0.0.40
codegen_flags: <defaults>
</compile_context>

<pallas_src>
import functools
import math

import jax
import jax.numpy as jnp
from jax.experimental import pallas as pl
from jax.experimental.pallas import tpu as pltpu

# ---- small shapes consistent with ConstraintPredictor.forward ----
BATCH = 8
INPUT_DIM = 32
HIDDEN_DIM = 32
NUM_CONSTRAINTS = 64
NUM_LAYERS = 2
FF_DIM = 4 * HIDDEN_DIM            # 128
LN_EPS = 1e-12                     # BertConfig default layer_norm_eps
C_PAD = 128                        # lane-dense padded output width

# ---- packed-operand static row layout ----
# bf16 slab #1: every 32-lane matmul weight, stacked along rows.
_W_IN_OFF = 0
_W_ATTN_OFF = INPUT_DIM                               # 32
_W_O2_OFF = _W_ATTN_OFF + NUM_LAYERS * HIDDEN_DIM     # 96
W32_ROWS = _W_O2_OFF + NUM_LAYERS * FF_DIM            # 352
# bf16 slab #2: every 128-lane matmul weight.
_W_I_OFF = 0
_W_OUT_OFF = NUM_LAYERS * HIDDEN_DIM                  # 64
W128_ROWS = _W_OUT_OFF + HIDDEN_DIM                   # 96
# fp32 vector slab (128 lanes wide): all bias / LayerNorm vectors + b_out.
_V_EMB, _V_LNE_G, _V_LNE_B = 0, 1, 2
_V_LAYER = 3              # +6 rows per layer: b_attn, ln1_g, ln1_b, bo2, ln2_g, ln2_b
_V_FF = _V_LAYER + 6 * NUM_LAYERS                     # 15
_V_BOUT = _V_FF + NUM_LAYERS                          # 17
VEC_ROWS = -(-(_V_BOUT + 1) // 8) * 8                 # 24 (sublane multiple)

_GELU_C = math.sqrt(2.0 / math.pi)


def _layernorm(h, gamma, beta):
    # single-pass variance: E[h^2] - mu^2 (two independent lane reductions).
    # Fine for O(1) BERT-scale activations; revert to two-pass if scales change.
    mu = jnp.mean(h, axis=-1, keepdims=True)
    ms = jnp.mean(h * h, axis=-1, keepdims=True)
    var = ms - mu * mu
    return (h - mu) * jax.lax.rsqrt(var + LN_EPS) * gamma + beta


def _gelu_tanh(x):
    # tanh-approximate GELU: transcendental goes to the EUP slot instead of a
    # long erf VALU polynomial (difference ~1e-3, far inside the 2e-2 tolerance).
    return 0.5 * x * (1.0 + jnp.tanh(_GELU_C * (x + 0.044715 * x * x * x)))


def constraint_predictor_kernel(
    x_ref,        # (TB, INPUT_DIM)      bf16
    w32_ref,      # (W32_ROWS, H)        bf16   [w_in | fused attn (L) | wo2 (L)]
    w128_ref,     # (W128_ROWS, C_PAD)   bf16   [wi (L) | w_out]
    vec_ref,      # (VEC_ROWS, C_PAD)    f32    packed bias / LayerNorm vectors
    out_ref,      # (TB, C_PAD)          bf16
):
    H, L, FF = HIDDEN_DIM, NUM_LAYERS, FF_DIM
    bf16 = jnp.bfloat16

    def hvec(r):                          # (1, H) f32 slice of the vector slab
        return vec_ref[r:r + 1, 0:H]

    # input projection + BERT embeddings (seq_len == 1 -> pos/token-type id 0,
    # all three embedding-time bias vectors pre-folded into row _V_EMB).
    h = jnp.dot(x_ref[...], w32_ref[_W_IN_OFF:_W_IN_OFF + INPUT_DIM, :],
                preferred_element_type=jnp.float32) + hvec(_V_EMB)
    h = _layernorm(h, hvec(_V_LNE_G), hvec(_V_LNE_B))

    # encoder layers (statically unrolled)
    for l in range(L):
        base = _V_LAYER + 6 * l
        w_attn = w32_ref[_W_ATTN_OFF + l * H:_W_ATTN_OFF + (l + 1) * H, :]
        wo2 = w32_ref[_W_O2_OFF + l * FF:_W_O2_OFF + (l + 1) * FF, :]
        wi = w128_ref[_W_I_OFF + l * H:_W_I_OFF + (l + 1) * H, :]

        # self-attention: softmax over one key == 1, so context == V exactly;
        # V-proj and attention-output dense were pre-fused host-side.
        attn = jnp.dot(h.astype(bf16), w_attn,
                       preferred_element_type=jnp.float32) + hvec(base + 0)
        h = _layernorm(attn + h, hvec(base + 1), hvec(base + 2))

        inter = _gelu_tanh(
            jnp.dot(h.astype(bf16), wi, preferred_element_type=jnp.float32)
            + vec_ref[_V_FF + l:_V_FF + l + 1, :])
        ffn = jnp.dot(inter.astype(bf16), wo2,
                      preferred_element_type=jnp.float32) + hvec(base + 3)
        h = _layernorm(ffn + h, hvec(base + 4), hvec(base + 5))

    # output projection + sigmoid (lane-dense padded width, bf16 writeback)
    logits = jnp.dot(h.astype(bf16), w128_ref[_W_OUT_OFF:_W_OUT_OFF + H, :],
                     preferred_element_type=jnp.float32) \
        + vec_ref[_V_BOUT:_V_BOUT + 1, :]
    out_ref[...] = jax.nn.sigmoid(logits).astype(out_ref.dtype)


@functools.partial(jax.jit, static_argnames=("tile_b",))
def _forward_padded(x_padded, kparams, *, tile_b):
    bp = x_padded.shape[0]
    w32, w128, vec = kparams
    n_steps = bp // tile_b
    const2 = lambda i: (0, 0)

    # VMEM budget (explicit so the same tile_b is valid on v5e/v6e/v7x):
    # in/out double buffers are bf16, weights ~60 KB, fp32 intermediates scratch.
    vmem_limit = (16 << 20) if tile_b > 128 else (4 << 20)

    # Advisory cost so XLA can overlap this small custom call with neighbors.
    flops_per_row = (2 * INPUT_DIM * HIDDEN_DIM
                     + NUM_LAYERS * (2 * HIDDEN_DIM * HIDDEN_DIM
                                     + 4 * HIDDEN_DIM * FF_DIM)
                     + 2 * HIDDEN_DIM * C_PAD)
    trans_per_row = NUM_LAYERS * FF_DIM + C_PAD + 3 * NUM_LAYERS + 1
    weight_bytes = (W32_ROWS * HIDDEN_DIM + W128_ROWS * C_PAD) * 2 \
        + VEC_ROWS * C_PAD * 4
    cost = pl.CostEstimate(
        flops=int(bp * flops_per_row),
        transcendentals=int(bp * trans_per_row),
        bytes_accessed=int(bp * (INPUT_DIM + C_PAD) * 2 + n_steps * weight_bytes),
    )

    return pl.pallas_call(
        constraint_predictor_kernel,
        out_shape=jax.ShapeDtypeStruct((bp, C_PAD), jnp.bfloat16),
        grid=(n_steps,),
        in_specs=[
            pl.BlockSpec((tile_b, INPUT_DIM), lambda i: (i, 0)),     # x (bf16)
            pl.BlockSpec((W32_ROWS, HIDDEN_DIM), const2),            # w32 slab
            pl.BlockSpec((W128_ROWS, C_PAD), const2),                # w128 slab
            pl.BlockSpec((VEC_ROWS, C_PAD), const2),                 # vec slab
        ],
        out_specs=pl.BlockSpec((tile_b, C_PAD), lambda i: (i, 0)),
        compiler_params=pltpu.CompilerParams(
            dimension_semantics=("parallel",),
            vmem_limit_bytes=vmem_limit,
        ),
        cost_estimate=cost,
    )(x_padded, w32, w128, vec)


def constraint_predictor_forward(x, kparams, *, tile_b=None):
    b = x.shape[0]
    if tile_b is None:
        if b <= 128:
            # single grid step; round the batch up to a sublane multiple
            tile_b = max(8, -(-b // 8) * 8)
        else:
            # >= 2 grid steps so the "parallel" batch axis shards across both
            # v7x TensorCores; cap at 512 rows to amortize the per-step floor
            # while keeping the per-step footprint small.
            tile_b = min(512, -(-(-(-b // 2)) // 8) * 8)
    bp = -(-b // tile_b) * tile_b
    x = x.astype(jnp.bfloat16)                       # host-side cast (bit-identical)
    if bp != b:
        x = jnp.pad(x, ((0, bp - b), (0, 0)))
    out = _forward_padded(x, kparams, tile_b=tile_b)
    return out[:b, :NUM_CONSTRAINTS].astype(jnp.float32)


def make_params(key):
    """Deterministic synthetic parameters (shapes follow ConstraintPredictor.__init__)."""
    std = 0.02
    ks = jax.random.split(key, 24)
    f32 = jnp.float32
    L, H = NUM_LAYERS, HIDDEN_DIM
    n = lambda k, shape, s=std: jax.random.normal(k, shape, f32) * s
    return dict(
        w_in=n(ks[0], (INPUT_DIM, H)), b_in=n(ks[1], (1, H)),
        pos=n(ks[2], (1, H)), tok=n(ks[3], (1, H)),
        lne_g=1.0 + n(ks[4], (1, H), 0.1), lne_b=n(ks[5], (1, H)),
        wv=n(ks[6], (L, H, H)), bv=n(ks[7], (L, 1, H)),
        wao=n(ks[8], (L, H, H)), bao=n(ks[9], (L, 1, H)),
        ln1_g=1.0 + n(ks[10], (L, 1, H), 0.1), ln1_b=n(ks[11], (L, 1, H)),
        wi=n(ks[12], (L, H, FF_DIM)), bi=n(ks[13], (L, 1, FF_DIM)),
        wo2=n(ks[14], (L, FF_DIM, H)), bo2=n(ks[15], (L, 1, H)),
        ln2_g=1.0 + n(ks[16], (L, 1, H), 0.1), ln2_b=n(ks[17], (L, 1, H)),
        w_out=n(ks[18], (H, NUM_CONSTRAINTS)), b_out=n(ks[19], (1, NUM_CONSTRAINTS)),
        # NOTE: query/key projection weights exist in the real module but do
        # not affect the output when seq_len == 1; intentionally omitted.
    )


def pack_params(p):
    """Host-side (one-time) folding / fusion / packing into the 3 kernel operands."""
    L = NUM_LAYERS
    bf16 = jnp.bfloat16

    # fold the three embedding-time bias vectors into one
    emb_bias = p["b_in"] + p["pos"] + p["tok"]

    # fuse V-proj + attention-output dense (exact at seq_len == 1):
    #   attn_out = h @ (Wv @ Wao) + (bv @ Wao + bao)
    w_attn = jnp.einsum("lhk,lkm->lhm", p["wv"], p["wao"])
    b_attn = jnp.einsum("lik,lkm->lim", p["bv"], p["wao"]) + p["bao"]

    # bf16 slab #1: all 32-lane weights [w_in | attn (L) | wo2 (L)]
    w32 = jnp.concatenate(
        [p["w_in"]] + [w_attn[l] for l in range(L)]
        + [p["wo2"][l] for l in range(L)], axis=0)                   # (W32_ROWS, H)

    # bf16 slab #2: all 128-lane weights [wi (L) | w_out padded to C_PAD]
    w_out = jnp.pad(p["w_out"], ((0, 0), (0, C_PAD - NUM_CONSTRAINTS)))
    w128 = jnp.concatenate([p["wi"][l] for l in range(L)] + [w_out],
                           axis=0)                                   # (W128_ROWS, C_PAD)

    # fp32 vector slab: one row per bias / LayerNorm vector, padded to 128 lanes
    def pad128(v):
        return jnp.pad(v, ((0, 0), (0, C_PAD - v.shape[1])))
    rows = [pad128(emb_bias), pad128(p["lne_g"]), pad128(p["lne_b"])]
    for l in range(L):
        rows += [pad128(b_attn[l]), pad128(p["ln1_g"][l]), pad128(p["ln1_b"][l]),
                 pad128(p["bo2"][l]), pad128(p["ln2_g"][l]), pad128(p["ln2_b"][l])]
    rows += [p["bi"][l] for l in range(L)]                           # (1, FF=128)
    rows += [pad128(p["b_out"])]
    vec = jnp.concatenate(rows, axis=0)
    vec = jnp.pad(vec, ((0, VEC_ROWS - vec.shape[0]), (0, 0)))       # (VEC_ROWS, C_PAD)

    return (w32.astype(bf16), w128.astype(bf16), vec.astype(jnp.float32))


def reference_forward(x, p):
    """Pure-JAX fp32 reference of the original module's forward (seq_len == 1)."""
    def ln(h, g, b):
        mu = jnp.mean(h, -1, keepdims=True)
        var = jnp.mean((h - mu) ** 2, -1, keepdims=True)
        return (h - mu) * jax.lax.rsqrt(var + LN_EPS) * g + b

    h = x @ p["w_in"] + p["b_in"] + p["pos"] + p["tok"]
    h = ln(h, p["lne_g"], p["lne_b"])
    for l in range(NUM_LAYERS):
        v = h @ p["wv"][l] + p["bv"][l]
        attn = v @ p["wao"][l] + p["bao"][l]
        h = ln(attn + h, p["ln1_g"][l], p["ln1_b"][l])
        pre = h @ p["wi"][l] + p["bi"][l]
        inter = 0.5 * pre * (1.0 + jax.lax.erf(pre / math.sqrt(2.0)))   # exact GELU
        ffn = inter @ p["wo2"][l] + p["bo2"][l]
        h = ln(ffn + h, p["ln2_g"][l], p["ln2_b"][l])
    logits = h @ p["w_out"] + p["b_out"]
    return jax.nn.sigmoid(logits)


if __name__ == "__main__":
    key = jax.random.PRNGKey(0)
    k_x, k_p = jax.random.split(key)
    x = jax.random.normal(k_x, (BATCH, INPUT_DIM), jnp.float32)
    raw = make_params(k_p)
    kparams = pack_params(raw)

    probs = constraint_predictor_forward(x, kparams)
    jax.block_until_ready(probs)

    assert probs.shape == (BATCH, NUM_CONSTRAINTS)
    assert bool(jnp.all((probs >= 0.0) & (probs <= 1.0)))

    # tolerance check vs. fp32 reference (bf16 weights/IO, tanh GELU, host fusion)
    ref = reference_forward(x, raw)
    max_err = float(jnp.max(jnp.abs(probs - ref)))
    assert max_err < 2e-2, f"max abs error vs fp32 reference: {max_err}"

    print("KERNEL_OK")
</pallas_src>

<mosaic_0001>
module attributes {stable_mosaic.version = 11 : i64} {
  func.func @constraint_predictor_kernel(%arg0: i32, %arg1: memref<8x32xbf16, #tpu.memory_space<vmem>>, %arg2: memref<352x32xbf16, #tpu.memory_space<vmem>>, %arg3: memref<96x128xbf16, #tpu.memory_space<vmem>>, %arg4: memref<24x128xf32, #tpu.memory_space<vmem>>, %arg5: memref<8x128xbf16, #tpu.memory_space<vmem>>) attributes {dimension_semantics = [#tpu.dimension_semantics<parallel>], iteration_bounds = array<i64: 1>, scalar_prefetch = 0 : i64, scratch_operands = 0 : i64, tpu.core_type = #tpu.core_type<tc>, window_params = [{transform_indices = @transform_0, window_bounds = array<i64: 8, 32>}, {pipeline_mode = #tpu.pipeline_mode<synchronous>, transform_indices = @transform_1, window_bounds = array<i64: 352, 32>}, {pipeline_mode = #tpu.pipeline_mode<synchronous>, transform_indices = @transform_2, window_bounds = array<i64: 96, 128>}, {pipeline_mode = #tpu.pipeline_mode<synchronous>, transform_indices = @transform_3, window_bounds = array<i64: 24, 128>}, {transform_indices = @transform_4, window_bounds = array<i64: 8, 128>}]} {
    %c0 = arith.constant 0 : index
    %c0_0 = arith.constant 0 : index
    %0 = vector.load %arg1[%c0, %c0_0] : memref<8x32xbf16, #tpu.memory_space<vmem>>, vector<8x32xbf16>
    %c0_1 = arith.constant 0 : index
    %c0_2 = arith.constant 0 : index
    %1 = vector.load %arg2[%c0_1, %c0_2] : memref<352x32xbf16, #tpu.memory_space<vmem>>, vector<32x32xbf16>
    %cst = arith.constant dense<0.000000e+00> : vector<8x32xf32>
    %2 = tpu.matmul %0, %1, %cst {dimension_numbers = #tpu.dot_dimension_numbers<[1], [0], [0], [1], [0, 0, 1, 1], [], []>} : vector<8x32xbf16>, vector<32x32xbf16>, vector<8x32xf32> -> vector<8x32xf32>
    %c0_3 = arith.constant 0 : index
    %c0_4 = arith.constant 0 : index
    %3 = vector.load %arg4[%c0_3, %c0_4] : memref<24x128xf32, #tpu.memory_space<vmem>>, vector<1x32xf32>
    %4 = vector.broadcast %3 : vector<1x32xf32> to vector<8x32xf32>
    %5 = arith.addf %2, %4 : vector<8x32xf32>
    %c1 = arith.constant 1 : index
    %c0_5 = arith.constant 0 : index
    %6 = vector.load %arg4[%c1, %c0_5] : memref<24x128xf32, #tpu.memory_space<vmem>>, vector<1x32xf32>
    %c2 = arith.constant 2 : index
    %c0_6 = arith.constant 0 : index
    %7 = vector.load %arg4[%c2, %c0_6] : memref<24x128xf32, #tpu.memory_space<vmem>>, vector<1x32xf32>
    %cst_7 = arith.constant dense<0.000000e+00> : vector<8xf32>
    %8 = vector.multi_reduction <add>, %5, %cst_7 [1] : vector<8x32xf32> to vector<8xf32>
    %9 = vector.shape_cast %8 : vector<8xf32> to vector<8x1xf32>
    %cst_8 = arith.constant 3.200000e+01 : f32
    %10 = vector.broadcast %cst_8 : f32 to vector<8x1xf32>
    %11 = arith.divf %9, %10 : vector<8x1xf32>
    %12 = arith.mulf %5, %5 : vector<8x32xf32>
    %cst_9 = arith.constant dense<0.000000e+00> : vector<8xf32>
    %13 = vector.multi_reduction <add>, %12, %cst_9 [1] : vector<8x32xf32> to vector<8xf32>
    %14 = vector.shape_cast %13 : vector<8xf32> to vector<8x1xf32>
    %cst_10 = arith.constant 3.200000e+01 : f32
    %15 = vector.broadcast %cst_10 : f32 to vector<8x1xf32>
    %16 = arith.divf %14, %15 : vector<8x1xf32>
    %17 = arith.mulf %11, %11 : vector<8x1xf32>
    %18 = arith.subf %16, %17 : vector<8x1xf32>
    %19 = vector.broadcast %11 : vector<8x1xf32> to vector<8x32xf32>
    %20 = arith.subf %5, %19 : vector<8x32xf32>
    %cst_11 = arith.constant 9.99999996E-13 : f32
    %21 = vector.broadcast %cst_11 : f32 to vector<8x1xf32>
    %22 = arith.addf %18, %21 : vector<8x1xf32>
    %23 = math.rsqrt %22 : vector<8x1xf32>
    %24 = vector.broadcast %23 : vector<8x1xf32> to vector<8x32xf32>
    %25 = arith.mulf %20, %24 : vector<8x32xf32>
    %26 = vector.broadcast %6 : vector<1x32xf32> to vector<8x32xf32>
    %27 = arith.mulf %25, %26 : vector<8x32xf32>
    %28 = vector.broadcast %7 : vector<1x32xf32> to vector<8x32xf32>
    %29 = arith.addf %27, %28 : vector<8x32xf32>
    %c32 = arith.constant 32 : index
    %c0_12 = arith.constant 0 : index
    %30 = vector.load %arg2[%c32, %c0_12] : memref<352x32xbf16, #tpu.memory_space<vmem>>, vector<32x32xbf16>
    %c96 = arith.constant 96 : index
    %c0_13 = arith.constant 0 : index
    %31 = vector.load %arg2[%c96, %c0_13] : memref<352x32xbf16, #tpu.memory_space<vmem>>, vector<128x32xbf16>
    %c0_14 = arith.constant 0 : index
    %c0_15 = arith.constant 0 : index
    %32 = vector.load %arg3[%c0_14, %c0_15] : memref<96x128xbf16, #tpu.memory_space<vmem>>, vector<32x128xbf16>
    %33 = arith.truncf %29 : vector<8x32xf32> to vector<8x32xbf16>
    %cst_16 = arith.constant dense<0.000000e+00> : vector<8x32xf32>
    %34 = tpu.matmul %33, %30, %cst_16 {dimension_numbers = #tpu.dot_dimension_numbers<[1], [0], [0], [1], [0, 0, 1, 1], [], []>} : vector<8x32xbf16>, vector<32x32xbf16>, vector<8x32xf32> -> vector<8x32xf32>
    %c3 = arith.constant 3 : index
    %c0_17 = arith.constant 0 : index
    %35 = vector.load %arg4[%c3, %c0_17] : memref<24x128xf32, #tpu.memory_space<vmem>>, vector<1x32xf32>
    %36 = vector.broadcast %35 : vector<1x32xf32> to vector<8x32xf32>
    %37 = arith.addf %34, %36 : vector<8x32xf32>
    %38 = arith.addf %37, %29 : vector<8x32xf32>
    %c4 = arith.constant 4 : index
    %c0_18 = arith.constant 0 : index
    %39 = vector.load %arg4[%c4, %c0_18] : memref<24x128xf32, #tpu.memory_space<vmem>>, vector<1x32xf32>
    %c5 = arith.constant 5 : index
    %c0_19 = arith.constant 0 : index
    %40 = vector.load %arg4[%c5, %c0_19] : memref<24x128xf32, #tpu.memory_space<vmem>>, vector<1x32xf32>
    %cst_20 = arith.constant dense<0.000000e+00> : vector<8xf32>
    %41 = vector.multi_reduction <add>, %38, %cst_20 [1] : vector<8x32xf32> to vector<8xf32>
    %42 = vector.shape_cast %41 : vector<8xf32> to vector<8x1xf32>
    %cst_21 = arith.constant 3.200000e+01 : f32
    %43 = vector.broadcast %cst_21 : f32 to vector<8x1xf32>
    %44 = arith.divf %42, %43 : vector<8x1xf32>
    %45 = arith.mulf %38, %38 : vector<8x32xf32>
    %cst_22 = arith.constant dense<0.000000e+00> : vector<8xf32>
    %46 = vector.multi_reduction <add>, %45, %cst_22 [1] : vector<8x32xf32> to vector<8xf32>
    %47 = vector.shape_cast %46 : vector<8xf32> to vector<8x1xf32>
    %cst_23 = arith.constant 3.200000e+01 : f32
    %48 = vector.broadcast %cst_23 : f32 to vector<8x1xf32>
    %49 = arith.divf %47, %48 : vector<8x1xf32>
    %50 = arith.mulf %44, %44 : vector<8x1xf32>
    %51 = arith.subf %49, %50 : vector<8x1xf32>
    %52 = vector.broadcast %44 : vector<8x1xf32> to vector<8x32xf32>
    %53 = arith.subf %38, %52 : vector<8x32xf32>
    %cst_24 = arith.constant 9.99999996E-13 : f32
    %54 = vector.broadcast %cst_24 : f32 to vector<8x1xf32>
    %55 = arith.addf %51, %54 : vector<8x1xf32>
    %56 = math.rsqrt %55 : vector<8x1xf32>
    %57 = vector.broadcast %56 : vector<8x1xf32> to vector<8x32xf32>
    %58 = arith.mulf %53, %57 : vector<8x32xf32>
    %59 = vector.broadcast %39 : vector<1x32xf32> to vector<8x32xf32>
    %60 = arith.mulf %58, %59 : vector<8x32xf32>
    %61 = vector.broadcast %40 : vector<1x32xf32> to vector<8x32xf32>
    %62 = arith.addf %60, %61 : vector<8x32xf32>
    %63 = arith.truncf %62 : vector<8x32xf32> to vector<8x32xbf16>
    %cst_25 = arith.constant dense<0.000000e+00> : vector<8x128xf32>
    %64 = tpu.matmul %63, %32, %cst_25 {dimension_numbers = #tpu.dot_dimension_numbers<[1], [0], [0], [1], [0, 0, 1, 1], [], []>} : vector<8x32xbf16>, vector<32x128xbf16>, vector<8x128xf32> -> vector<8x128xf32>
    %c15 = arith.constant 15 : index
    %c0_26 = arith.constant 0 : index
    %65 = vector.load %arg4[%c15, %c0_26] : memref<24x128xf32, #tpu.memory_space<vmem>>, vector<1x128xf32>
    %66 = vector.broadcast %65 : vector<1x128xf32> to vector<8x128xf32>
    %67 = arith.addf %64, %66 : vector<8x128xf32>
    %cst_27 = arith.constant 5.000000e-01 : f32
    %68 = vector.broadcast %cst_27 : f32 to vector<8x128xf32>
    %69 = arith.mulf %68, %67 : vector<8x128xf32>
    %cst_28 = arith.constant 4.471500e-02 : f32
    %70 = vector.broadcast %cst_28 : f32 to vector<8x128xf32>
    %71 = arith.mulf %70, %67 : vector<8x128xf32>
    %72 = arith.mulf %71, %67 : vector<8x128xf32>
    %73 = arith.mulf %72, %67 : vector<8x128xf32>
    %74 = arith.addf %67, %73 : vector<8x128xf32>
    %cst_29 = arith.constant 0.797884583 : f32
    %75 = vector.broadcast %cst_29 : f32 to vector<8x128xf32>
    %76 = arith.mulf %75, %74 : vector<8x128xf32>
    %77 = math.tanh %76 : vector<8x128xf32>
    %cst_30 = arith.constant 1.000000e+00 : f32
    %78 = vector.broadcast %cst_30 : f32 to vector<8x128xf32>
    %79 = arith.addf %78, %77 : vector<8x128xf32>
    %80 = arith.mulf %69, %79 : vector<8x128xf32>
    %81 = arith.truncf %80 : vector<8x128xf32> to vector<8x128xbf16>
    %cst_31 = arith.constant dense<0.000000e+00> : vector<8x32xf32>
    %82 = tpu.matmul %81, %31, %cst_31 {dimension_numbers = #tpu.dot_dimension_numbers<[1], [0], [0], [1], [0, 0, 1, 1], [], []>} : vector<8x128xbf16>, vector<128x32xbf16>, vector<8x32xf32> -> vector<8x32xf32>
    %c6 = arith.constant 6 : index
    %c0_32 = arith.constant 0 : index
    %83 = vector.load %arg4[%c6, %c0_32] : memref<24x128xf32, #tpu.memory_space<vmem>>, vector<1x32xf32>
    %84 = vector.broadcast %83 : vector<1x32xf32> to vector<8x32xf32>
    %85 = arith.addf %82, %84 : vector<8x32xf32>
    %86 = arith.addf %85, %62 : vector<8x32xf32>
    %c7 = arith.constant 7 : index
    %c0_33 = arith.constant 0 : index
    %87 = vector.load %arg4[%c7, %c0_33] : memref<24x128xf32, #tpu.memory_space<vmem>>, vector<1x32xf32>
    %c8 = arith.constant 8 : index
    %c0_34 = arith.constant 0 : index
    %88 = vector.load %arg4[%c8, %c0_34] : memref<24x128xf32, #tpu.memory_space<vmem>>, vector<1x32xf32>
    %cst_35 = arith.constant dense<0.000000e+00> : vector<8xf32>
    %89 = vector.multi_reduction <add>, %86, %cst_35 [1] : vector<8x32xf32> to vector<8xf32>
    %90 = vector.shape_cast %89 : vector<8xf32> to vector<8x1xf32>
    %cst_36 = arith.constant 3.200000e+01 : f32
    %91 = vector.broadcast %cst_36 : f32 to vector<8x1xf32>
    %92 = arith.divf %90, %91 : vector<8x1xf32>
    %93 = arith.mulf %86, %86 : vector<8x32xf32>
    %cst_37 = arith.constant dense<0.000000e+00> : vector<8xf32>
    %94 = vector.multi_reduction <add>, %93, %cst_37 [1] : vector<8x32xf32> to vector<8xf32>
    %95 = vector.shape_cast %94 : vector<8xf32> to vector<8x1xf32>
    %cst_38 = arith.constant 3.200000e+01 : f32
    %96 = vector.broadcast %cst_38 : f32 to vector<8x1xf32>
    %97 = arith.divf %95, %96 : vector<8x1xf32>
    %98 = arith.mulf %92, %92 : vector<8x1xf32>
    %99 = arith.subf %97, %98 : vector<8x1xf32>
    %100 = vector.broadcast %92 : vector<8x1xf32> to vector<8x32xf32>
    %101 = arith.subf %86, %100 : vector<8x32xf32>
    %cst_39 = arith.constant 9.99999996E-13 : f32
    %102 = vector.broadcast %cst_39 : f32 to vector<8x1xf32>
    %103 = arith.addf %99, %102 : vector<8x1xf32>
    %104 = math.rsqrt %103 : vector<8x1xf32>
    %105 = vector.broadcast %104 : vector<8x1xf32> to vector<8x32xf32>
    %106 = arith.mulf %101, %105 : vector<8x32xf32>
    %107 = vector.broadcast %87 : vector<1x32xf32> to vector<8x32xf32>
    %108 = arith.mulf %106, %107 : vector<8x32xf32>
    %109 = vector.broadcast %88 : vector<1x32xf32> to vector<8x32xf32>
    %110 = arith.addf %108, %109 : vector<8x32xf32>
    %c64 = arith.constant 64 : index
    %c0_40 = arith.constant 0 : index
    %111 = vector.load %arg2[%c64, %c0_40] : memref<352x32xbf16, #tpu.memory_space<vmem>>, vector<32x32xbf16>
    %c224 = arith.constant 224 : index
    %c0_41 = arith.constant 0 : index
    %112 = vector.load %arg2[%c224, %c0_41] : memref<352x32xbf16, #tpu.memory_space<vmem>>, vector<128x32xbf16>
    %c32_42 = arith.constant 32 : index
    %c0_43 = arith.constant 0 : index
    %113 = vector.load %arg3[%c32_42, %c0_43] : memref<96x128xbf16, #tpu.memory_space<vmem>>, vector<32x128xbf16>
    %114 = arith.truncf %110 : vector<8x32xf32> to vector<8x32xbf16>
    %cst_44 = arith.constant dense<0.000000e+00> : vector<8x32xf32>
    %115 = tpu.matmul %114, %111, %cst_44 {dimension_numbers = #tpu.dot_dimension_numbers<[1], [0], [0], [1], [0, 0, 1, 1], [], []>} : vector<8x32xbf16>, vector<32x32xbf16>, vector<8x32xf32> -> vector<8x32xf32>
    %c9 = arith.constant 9 : index
    %c0_45 = arith.constant 0 : index
    %116 = vector.load %arg4[%c9, %c0_45] : memref<24x128xf32, #tpu.memory_space<vmem>>, vector<1x32xf32>
    %117 = vector.broadcast %116 : vector<1x32xf32> to vector<8x32xf32>
    %118 = arith.addf %115, %117 : vector<8x32xf32>
    %119 = arith.addf %118, %110 : vector<8x32xf32>
    %c10 = arith.constant 10 : index
    %c0_46 = arith.constant 0 : index
    %120 = vector.load %arg4[%c10, %c0_46] : memref<24x128xf32, #tpu.memory_space<vmem>>, vector<1x32xf32>
    %c11 = arith.constant 11 : index
    %c0_47 = arith.constant 0 : index
    %121 = vector.load %arg4[%c11, %c0_47] : memref<24x128xf32, #tpu.memory_space<vmem>>, vector<1x32xf32>
    %cst_48 = arith.constant dense<0.000000e+00> : vector<8xf32>
    %122 = vector.multi_reduction <add>, %119, %cst_48 [1] : vector<8x32xf32> to vector<8xf32>
    %123 = vector.shape_cast %122 : vector<8xf32> to vector<8x1xf32>
    %cst_49 = arith.constant 3.200000e+01 : f32
    %124 = vector.broadcast %cst_49 : f32 to vector<8x1xf32>
    %125 = arith.divf %123, %124 : vector<8x1xf32>
    %126 = arith.mulf %119, %119 : vector<8x32xf32>
    %cst_50 = arith.constant dense<0.000000e+00> : vector<8xf32>
    %127 = vector.multi_reduction <add>, %126, %cst_50 [1] : vector<8x32xf32> to vector<8xf32>
    %128 = vector.shape_cast %127 : vector<8xf32> to vector<8x1xf32>
    %cst_51 = arith.constant 3.200000e+01 : f32
    %129 = vector.broadcast %cst_51 : f32 to vector<8x1xf32>
    %130 = arith.divf %128, %129 : vector<8x1xf32>
    %131 = arith.mulf %125, %125 : vector<8x1xf32>
    %132 = arith.subf %130, %131 : vector<8x1xf32>
    %133 = vector.broadcast %125 : vector<8x1xf32> to vector<8x32xf32>
    %134 = arith.subf %119, %133 : vector<8x32xf32>
    %cst_52 = arith.constant 9.99999996E-13 : f32
    %135 = vector.broadcast %cst_52 : f32 to vector<8x1xf32>
    %136 = arith.addf %132, %135 : vector<8x1xf32>
    %137 = math.rsqrt %136 : vector<8x1xf32>
    %138 = vector.broadcast %137 : vector<8x1xf32> to vector<8x32xf32>
    %139 = arith.mulf %134, %138 : vector<8x32xf32>
    %140 = vector.broadcast %120 : vector<1x32xf32> to vector<8x32xf32>
    %141 = arith.mulf %139, %140 : vector<8x32xf32>
    %142 = vector.broadcast %121 : vector<1x32xf32> to vector<8x32xf32>
    %143 = arith.addf %141, %142 : vector<8x32xf32>
    %144 = arith.truncf %143 : vector<8x32xf32> to vector<8x32xbf16>
    %cst_53 = arith.constant dense<0.000000e+00> : vector<8x128xf32>
    %145 = tpu.matmul %144, %113, %cst_53 {dimension_numbers = #tpu.dot_dimension_numbers<[1], [0], [0], [1], [0, 0, 1, 1], [], []>} : vector<8x32xbf16>, vector<32x128xbf16>, vector<8x128xf32> -> vector<8x128xf32>
    %c16 = arith.constant 16 : index
    %c0_54 = arith.constant 0 : index
    %146 = vector.load %arg4[%c16, %c0_54] : memref<24x128xf32, #tpu.memory_space<vmem>>, vector<1x128xf32>
    %147 = vector.broadcast %146 : vector<1x128xf32> to vector<8x128xf32>
    %148 = arith.addf %145, %147 : vector<8x128xf32>
    %cst_55 = arith.constant 5.000000e-01 : f32
    %149 = vector.broadcast %cst_55 : f32 to vector<8x128xf32>
    %150 = arith.mulf %149, %148 : vector<8x128xf32>
    %cst_56 = arith.constant 4.471500e-02 : f32
    %151 = vector.broadcast %cst_56 : f32 to vector<8x128xf32>
    %152 = arith.mulf %151, %148 : vector<8x128xf32>
    %153 = arith.mulf %152, %148 : vector<8x128xf32>
    %154 = arith.mulf %153, %148 : vector<8x128xf32>
    %155 = arith.addf %148, %154 : vector<8x128xf32>
    %cst_57 = arith.constant 0.797884583 : f32
    %156 = vector.broadcast %cst_57 : f32 to vector<8x128xf32>
    %157 = arith.mulf %156, %155 : vector<8x128xf32>
    %158 = math.tanh %157 : vector<8x128xf32>
    %cst_58 = arith.constant 1.000000e+00 : f32
    %159 = vector.broadcast %cst_58 : f32 to vector<8x128xf32>
    %160 = arith.addf %159, %158 : vector<8x128xf32>
    %161 = arith.mulf %150, %160 : vector<8x128xf32>
    %162 = arith.truncf %161 : vector<8x128xf32> to vector<8x128xbf16>
    %cst_59 = arith.constant dense<0.000000e+00> : vector<8x32xf32>
    %163 = tpu.matmul %162, %112, %cst_59 {dimension_numbers = #tpu.dot_dimension_numbers<[1], [0], [0], [1], [0, 0, 1, 1], [], []>} : vector<8x128xbf16>, vector<128x32xbf16>, vector<8x32xf32> -> vector<8x32xf32>
    %c12 = arith.constant 12 : index
    %c0_60 = arith.constant 0 : index
    %164 = vector.load %arg4[%c12, %c0_60] : memref<24x128xf32, #tpu.memory_space<vmem>>, vector<1x32xf32>
    %165 = vector.broadcast %164 : vector<1x32xf32> to vector<8x32xf32>
    %166 = arith.addf %163, %165 : vector<8x32xf32>
    %167 = arith.addf %166, %143 : vector<8x32xf32>
    %c13 = arith.constant 13 : index
    %c0_61 = arith.constant 0 : index
    %168 = vector.load %arg4[%c13, %c0_61] : memref<24x128xf32, #tpu.memory_space<vmem>>, vector<1x32xf32>
    %c14 = arith.constant 14 : index
    %c0_62 = arith.constant 0 : index
    %169 = vector.load %arg4[%c14, %c0_62] : memref<24x128xf32, #tpu.memory_space<vmem>>, vector<1x32xf32>
    %cst_63 = arith.constant dense<0.000000e+00> : vector<8xf32>
    %170 = vector.multi_reduction <add>, %167, %cst_63 [1] : vector<8x32xf32> to vector<8xf32>
    %171 = vector.shape_cast %170 : vector<8xf32> to vector<8x1xf32>
    %cst_64 = arith.constant 3.200000e+01 : f32
    %172 = vector.broadcast %cst_64 : f32 to vector<8x1xf32>
    %173 = arith.divf %171, %172 : vector<8x1xf32>
    %174 = arith.mulf %167, %167 : vector<8x32xf32>
    %cst_65 = arith.constant dense<0.000000e+00> : vector<8xf32>
    %175 = vector.multi_reduction <add>, %174, %cst_65 [1] : vector<8x32xf32> to vector<8xf32>
    %176 = vector.shape_cast %175 : vector<8xf32> to vector<8x1xf32>
    %cst_66 = arith.constant 3.200000e+01 : f32
    %177 = vector.broadcast %cst_66 : f32 to vector<8x1xf32>
    %178 = arith.divf %176, %177 : vector<8x1xf32>
    %179 = arith.mulf %173, %173 : vector<8x1xf32>
    %180 = arith.subf %178, %179 : vector<8x1xf32>
    %181 = vector.broadcast %173 : vector<8x1xf32> to vector<8x32xf32>
    %182 = arith.subf %167, %181 : vector<8x32xf32>
    %cst_67 = arith.constant 9.99999996E-13 : f32
    %183 = vector.broadcast %cst_67 : f32 to vector<8x1xf32>
    %184 = arith.addf %180, %183 : vector<8x1xf32>
    %185 = math.rsqrt %184 : vector<8x1xf32>
    %186 = vector.broadcast %185 : vector<8x1xf32> to vector<8x32xf32>
    %187 = arith.mulf %182, %186 : vector<8x32xf32>
    %188 = vector.broadcast %168 : vector<1x32xf32> to vector<8x32xf32>
    %189 = arith.mulf %187, %188 : vector<8x32xf32>
    %190 = vector.broadcast %169 : vector<1x32xf32> to vector<8x32xf32>
    %191 = arith.addf %189, %190 : vector<8x32xf32>
    %192 = arith.truncf %191 : vector<8x32xf32> to vector<8x32xbf16>
    %c64_68 = arith.constant 64 : index
    %c0_69 = arith.constant 0 : index
    %193 = vector.load %arg3[%c64_68, %c0_69] : memref<96x128xbf16, #tpu.memory_space<vmem>>, vector<32x128xbf16>
    %cst_70 = arith.constant dense<0.000000e+00> : vector<8x128xf32>
    %194 = tpu.matmul %192, %193, %cst_70 {dimension_numbers = #tpu.dot_dimension_numbers<[1], [0], [0], [1], [0, 0, 1, 1], [], []>} : vector<8x32xbf16>, vector<32x128xbf16>, vector<8x128xf32> -> vector<8x128xf32>
    %c17 = arith.constant 17 : index
    %c0_71 = arith.constant 0 : index
    %195 = vector.load %arg4[%c17, %c0_71] : memref<24x128xf32, #tpu.memory_space<vmem>>, vector<1x128xf32>
    %196 = vector.broadcast %195 : vector<1x128xf32> to vector<8x128xf32>
    %197 = arith.addf %194, %196 : vector<8x128xf32>
    %198 = arith.negf %197 : vector<8x128xf32>
    %199 = math.exp %198 : vector<8x128xf32>
    %cst_72 = arith.constant 1.000000e+00 : f32
    %200 = vector.broadcast %cst_72 : f32 to vector<8x128xf32>
    %201 = arith.addf %200, %199 : vector<8x128xf32>
    %202 = arith.divf %200, %201 : vector<8x128xf32>
    %203 = arith.truncf %202 : vector<8x128xf32> to vector<8x128xbf16>
    %c0_73 = arith.constant 0 : index
    %c0_74 = arith.constant 0 : index
    %204 = vector.load %arg5[%c0_73, %c0_74] : memref<8x128xbf16, #tpu.memory_space<vmem>>, vector<8x128xbf16>
    tpu.vector_store %arg5[%c0_73, %c0_74], %203 {strides = array<i32>} : memref<8x128xbf16, #tpu.memory_space<vmem>>, vector<8x128xbf16>,
    return
  }
  func.func @transform_0(%arg0: i32) -> (i32, i32) {
    %c0_i32 = arith.constant 0 : i32
    %c0_i32_0 = arith.constant 0 : i32
    return %arg0, %c0_i32 : i32, i32
  }
  func.func @transform_1(%arg0: i32) -> (i32, i32) {
    %c0_i32 = arith.constant 0 : i32
    %c0_i32_0 = arith.constant 0 : i32
    %c0_i32_1 = arith.constant 0 : i32
    return %c0_i32, %c0_i32_0 : i32, i32
  }
  func.func @transform_2(%arg0: i32) -> (i32, i32) {
    %c0_i32 = arith.constant 0 : i32
    %c0_i32_0 = arith.constant 0 : i32
    %c0_i32_1 = arith.constant 0 : i32
    return %c0_i32, %c0_i32_0 : i32, i32
  }
  func.func @transform_3(%arg0: i32) -> (i32, i32) {
    %c0_i32 = arith.constant 0 : i32
    %c0_i32_0 = arith.constant 0 : i32
    %c0_i32_1 = arith.constant 0 : i32
    return %c0_i32, %c0_i32_0 : i32, i32
  }
  func.func @transform_4(%arg0: i32) -> (i32, i32) {
    %c0_i32 = arith.constant 0 : i32
    %c0_i32_0 = arith.constant 0 : i32
    return %arg0, %c0_i32 : i32, i32
  }
}

</mosaic_0001>

<llo_original>
// kernel: _forward_padded.1
$region0: #{_forward_padded.1}
  #allocation0 [shape = 'u32[]', space=smem, size = 0x4, offset = 0x4, fixed_abs, tag = 'smem constant byte address 0x4 - core index']
  #allocation1 [shape = 'u32[144,128]{1,0:T(1,128)}', space=vmem, size = 0x12000, scoped, tag = 'internal scratch']
  %s0 = inlined_call_operand.vmem [shape: bf16[8,32], index: 0, kind: input, shape index: {}]
  %s1 = inlined_call_operand.vmem [shape: bf16[352,32], index: 1, kind: input, shape index: {}]
  %s2 = inlined_call_operand.vmem [shape: bf16[96,128], index: 2, kind: input, shape index: {}]
  %s3 = inlined_call_operand.vmem [shape: f32[24,128], index: 3, kind: input, shape index: {}]
  %s4 = inlined_call_operand.hbm [shape: bf16[8,128], index: 4, kind: output, shape index: {}]
  %s5 = sld [smem:[#allocation0]]
  $region26: #{_forward_padded.1} parent=0
    _
  %s7 = ssub.s32 1, %s5
  %s8 = scalar_select 0, %s7, %s5
  $region1: #{_forward_padded.1} parent=0
    #allocation2 [shape = 'u8[2048]{0}', space=vmem, size = 0x800, scoped, tag = 'output window, operand 0, single buffered']
    #allocation3 [shape = 's32[1]{0}', space=sflag, size = 0x4, scoped, tag = 'scoped memory for _forward_padded.1']
    %9 = vsyncpa [#allocation3], 0
    // Predicated region
    $region2: #{_forward_padded.1} parent=1 // pred_check
      _
    $region3: #{_forward_padded.1} parent=1 // pred_check_branch
      %11 = sbr.rel (0) target = $region5
    $region4: #{_forward_padded.1} parent=1 // pred_region
      _
    $region5: #{_forward_padded.1} parent=1 // pred_fallthru
      _
    // Predicated region
    $region6: #{_forward_padded.1} parent=1 // pred_check
      _
    $region7: #{_forward_padded.1} parent=1 // pred_check_branch
      %13 = sbr.rel (0) target = $region9
    $region8: #{_forward_padded.1} parent=1 // pred_region
      _
    $region9: #{_forward_padded.1} parent=1 // pred_fallthru
      _
    // Predicated region
    $region10: #{_forward_padded.1} parent=1 // pred_check
      _
    $region11: #{_forward_padded.1} parent=1 // pred_check_branch
      %15 = sbr.rel (0) target = $region13
    $region12: #{_forward_padded.1} parent=1 // pred_region
      _
    $region13: #{_forward_padded.1} parent=1 // pred_fallthru
      _
    // Predicated region
    $region14: #{_forward_padded.1} parent=1 // pred_check
      _
    $region15: #{_forward_padded.1} parent=1 // pred_check_branch
      %17 = sbr.rel (0) target = $region17
    $region16: #{_forward_padded.1} parent=1 // pred_region
      _
    $region17: #{_forward_padded.1} parent=1 // pred_fallthru
      _
    %v19 = vld [vmem:[%s0] sm:$0xf]
    %v20 = vld [vmem:[%s1] sm:$0xf]
    %v21 = vld [vmem:[%s1 + $0x4] sm:$0xf]
    %v22 = vld [vmem:[%s1 + $0x8] sm:$0xf]
    %v23 = vld [vmem:[%s1 + $0xc] sm:$0xf]
    %v24 = vld [vmem:[%s3] sm:$0x1]
    %v25 = vlaneseq
    %v26 = vshrl.u32 %v25, 7
    %v27 = vsub.s32 0, %v26
    %v28 = vrot.slane %v24, %v27
    %v33 = vunpack.c.l.b16 %v20
    %v34 = vunpack.c.l.b16 %v21
    %v35 = vunpack.c.l.b16 %v22
    %v36 = vunpack.c.l.b16 %v23
    %v37 = vpack.c.b16 %v34, %v33
    %v38 = vpack.c.b16 %v36, %v35
    %vm41 = vcmask 261120
    %v43 = vsel %vm41, %v19, 0
    %45 = vmatprep.subr.bf16.mxu0 0
    %46 = vmatpush1.bf16.msra.mxu0 0
    %47 = vmatprep.subr.bf16.mxu0 0
    %48 = vmatpush1.bf16.msra.mxu0 0
    %49 = vmatprep.subr.bf16.mxu0 0
    %50 = vmatpush1.bf16.msra.mxu0 0
    %51 = vmatprep.subr.bf16.mxu0 0
    %52 = vmatpush1.bf16.msra.mxu0 0
    %53 = vmatprep.subr.bf16.mxu0 0
    %54 = vmatpush1.bf16.msra.mxu0 0
    %55 = vmatprep.subr.bf16.mxu0 0
    %56 = vmatpush1.bf16.msra.mxu0 0
    %57 = vmatprep.subr.bf16.mxu0 0
    %58 = vmatpush1.bf16.msra.mxu0 %v38
    %59 = vmatprep.subr.bf16.mxu0 0
    %60 = vmatpush1.bf16.msra.mxu0 %v37
    %61 = vmatprep.subr.bf16.mxu0 0
    %62 = vmatpush2.bf16.msra.mxu0 0
    %63 = vmatprep.subr.bf16.mxu0 0
    %64 = vmatpush2.bf16.msra.mxu0 0
    %65 = vmatprep.subr.bf16.mxu0 0
    %66 = vmatpush2.bf16.msra.mxu0 0
    %67 = vmatprep.subr.bf16.mxu0 0
    %68 = vmatpush2.bf16.msra.mxu0 0
    %69 = vmatprep.subr.bf16.mxu0 0
    %70 = vmatpush2.bf16.msra.mxu0 0
    %71 = vmatprep.subr.bf16.mxu0 0
    %72 = vmatpush2.bf16.msra.mxu0 0
    %73 = vmatprep.subr.bf16.mxu0 0
    %74 = vmatpush2.bf16.msra.mxu0 0
    %75 = vmatprep.subr.bf16.mxu0 0
    %76 = vmatpush2.bf16.msra.mxu0 0
    %77 = vmatprep.mubr.bf16.mxu0 0
    %78 = vmatmul.mubr.bf16.gmra.mxu0 %v43
    %v79 = vpop.f32.mrf.mxu0
    %v80 = vadd.f32 %v28, %v79
    %v81 = vpop.f32.mrf.mxu0
    %v82 = vpop.f32.mrf.mxu0
    %v83 = vpop.f32.mrf.mxu0
    %84 = vdwg.mxu0
    %v85 = vld [vmem:[%s3 + $0x1] sm:$0x1]
    %v86 = vld [vmem:[%s3 + $0x2] sm:$0x1]
    %v87 = vsel %vm41, %v80, 0.0
    %88 = vadd.xlane.f32.xlu0 %v87
    %v89 = vpop.xlane.xlu0 %88
    %v90 = vrcp.pop 32.0
    %v91 = vmul.f32 %v89, %v90
    %v92 = vmul.f32 %v80, %v80
    %v93 = vsel %vm41, %v92, 0.0
    %94 = vadd.xlane.f32.xlu0 %v93
    %v95 = vpop.xlane.xlu0 %94
    %v96 = vmul.f32 %v95, %v90
    %v97 = vmul.f32 %v91, %v91
    %v98 = vsub.f32 %v96, %v97
    %v99 = vsub.f32 %v80, %v91
    %v100 = vadd.f32 %v98, 1e-12
    %v101 = vrsqrt.pop %v100
    %v102 = vmul.f32 %v99, %v101
    %v103 = vlaneseq
    %v104 = vshrl.u32 %v103, 7
    %v105 = vsub.s32 0, %v104
    %v106 = vrot.slane %v85, %v105
    %v107 = vmul.f32 %v102, %v106
    %v108 = vlaneseq
    %v109 = vshrl.u32 %v108, 7
    %v110 = vsub.s32 0, %v109
    %v111 = vrot.slane %v86, %v110
    %v112 = vadd.f32 %v107, %v111
    %v113 = vld [vmem:[%s1 + $0x10] sm:$0xf]
    %v114 = vld [vmem:[%s1 + $0x14] sm:$0xf]
    %v115 = vld [vmem:[%s1 + $0x18] sm:$0xf]
    %v116 = vld [vmem:[%s1 + $0x1c] sm:$0xf]
    %v117 = vld [vmem:[%s1 + $0x30] sm:$0xf]
    %v118 = vld [vmem:[%s1 + $0x34] sm:$0xf]
    %v119 = vld [vmem:[%s1 + $0x38] sm:$0xf]
    %v120 = vld [vmem:[%s1 + $0x3c] sm:$0xf]
    %v121 = vld [vmem:[%s1 + $0x40] sm:$0xf]
    %v122 = vld [vmem:[%s1 + $0x44] sm:$0xf]
    %v123 = vld [vmem:[%s1 + $0x48] sm:$0xf]
    %v124 = vld [vmem:[%s1 + $0x4c] sm:$0xf]
    %v125 = vld [vmem:[%s1 + $0x50] sm:$0xf]
    %v126 = vld [vmem:[%s1 + $0x54] sm:$0xf]
    %v127 = vld [vmem:[%s1 + $0x58] sm:$0xf]
    %v128 = vld [vmem:[%s1 + $0x5c] sm:$0xf]
    %v129 = vld [vmem:[%s1 + $0x60] sm:$0xf]
    %v130 = vld [vmem:[%s1 + $0x64] sm:$0xf]
    %v131 = vld [vmem:[%s1 + $0x68] sm:$0xf]
    %v132 = vld [vmem:[%s1 + $0x6c] sm:$0xf]
    %v133 = vld [vmem:[%s2] sm:$0xf]
    %v134 = vld [vmem:[%s2 + $0x4] sm:$0xf]
    %v135 = vld [vmem:[%s2 + $0x8] sm:$0xf]
    %v136 = vld [vmem:[%s2 + $0xc] sm:$0xf]
    %v137 = vpack.c.bf16 %v112, %v112
    %v138 = vld [vmem:[%s3 + $0x3] sm:$0x1]
    %v139 = vlaneseq
    %v140 = vshrl.u32 %v139, 7
    %v141 = vsub.s32 0, %v140
    %v142 = vrot.slane %v138, %v141
    %v147 = vunpack.c.l.b16 %v113
    %v148 = vunpack.c.l.b16 %v114
    %v149 = vunpack.c.l.b16 %v115
    %v150 = vunpack.c.l.b16 %v116
    %v151 = vpack.c.b16 %v148, %v147
    %v152 = vpack.c.b16 %v150, %v149
    %v156 = vsel %vm41, %v137, 0
    %158 = vmatprep.subr.bf16.mxu0 0
    %159 = vmatpush1.bf16.msra.mxu0 0
    %160 = vmatprep.subr.bf16.mxu0 0
    %161 = vmatpush1.bf16.msra.mxu0 0
    %162 = vmatprep.subr.bf16.mxu0 0
    %163 = vmatpush1.bf16.msra.mxu0 0
    %164 = vmatprep.subr.bf16.mxu0 0
    %165 = vmatpush1.bf16.msra.mxu0 0
    %166 = vmatprep.subr.bf16.mxu0 0
    %167 = vmatpush1.bf16.msra.mxu0 0
    %168 = vmatprep.subr.bf16.mxu0 0
    %169 = vmatpush1.bf16.msra.mxu0 0
    %170 = vmatprep.subr.bf16.mxu0 0
    %171 = vmatpush1.bf16.msra.mxu0 %v152
    %172 = vmatprep.subr.bf16.mxu0 0
    %173 = vmatpush1.bf16.msra.mxu0 %v151
    %174 = vmatprep.subr.bf16.mxu0 0
    %175 = vmatpush2.bf16.msra.mxu0 0
    %176 = vmatprep.subr.bf16.mxu0 0
    %177 = vmatpush2.bf16.msra.mxu0 0
    %178 = vmatprep.subr.bf16.mxu0 0
    %179 = vmatpush2.bf16.msra.mxu0 0
    %180 = vmatprep.subr.bf16.mxu0 0
    %181 = vmatpush2.bf16.msra.mxu0 0
    %182 = vmatprep.subr.bf16.mxu0 0
    %183 = vmatpush2.bf16.msra.mxu0 0
    %184 = vmatprep.subr.bf16.mxu0 0
    %185 = vmatpush2.bf16.msra.mxu0 0
    %186 = vmatprep.subr.bf16.mxu0 0
    %187 = vmatpush2.bf16.msra.mxu0 0
    %188 = vmatprep.subr.bf16.mxu0 0
    %189 = vmatpush2.bf16.msra.mxu0 0
    %190 = vmatprep.mubr.bf16.mxu0 0
    %191 = vmatmul.mubr.bf16.gmra.mxu0 %v156
    %v192 = vpop.f32.mrf.mxu0
    %v193 = vadd.f32 %v142, %v192
    %v194 = vpop.f32.mrf.mxu0
    %v195 = vpop.f32.mrf.mxu0
    %v196 = vpop.f32.mrf.mxu0
    %197 = vdwg.mxu0
    %v198 = vadd.f32 %v193, %v112
    %v199 = vld [vmem:[%s3 + $0x4] sm:$0x1]
    %v200 = vld [vmem:[%s3 + $0x5] sm:$0x1]
    %v201 = vsel %vm41, %v198, 0.0
    %202 = vadd.xlane.f32.xlu0 %v201
    %v203 = vpop.xlane.xlu0 %202
    %v204 = vmul.f32 %v203, %v90
    %v205 = vmul.f32 %v198, %v198
    %v206 = vsel %vm41, %v205, 0.0
    %207 = vadd.xlane.f32.xlu0 %v206
    %v208 = vpop.xlane.xlu0 %207
    %v209 = vmul.f32 %v208, %v90
    %v210 = vmul.f32 %v204, %v204
    %v211 = vsub.f32 %v209, %v210
    %v212 = vsub.f32 %v198, %v204
    %v213 = vadd.f32 %v211, 1e-12
    %v214 = vrsqrt.pop %v213
    %v215 = vmul.f32 %v212, %v214
    %v216 = vlaneseq
    %v217 = vshrl.u32 %v216, 7
    %v218 = vsub.s32 0, %v217
    %v219 = vrot.slane %v199, %v218
    %v220 = vmul.f32 %v215, %v219
    %v221 = vlaneseq
    %v222 = vshrl.u32 %v221, 7
    %v223 = vsub.s32 0, %v222
    %v224 = vrot.slane %v200, %v223
    %v225 = vadd.f32 %v220, %v224
    %v226 = vpack.c.bf16 %v225, %v225
    %v227 = vld [vmem:[%s3 + $0xf] sm:$0x1]
    %v228 = vlaneseq
    %v229 = vshrl.u32 %v228, 7
    %v230 = vsub.s32 0, %v229
    %v231 = vrot.slane %v227, %v230
    %v236 = vunpack.c.l.b16 %v133
    %v237 = vunpack.c.l.b16 %v134
    %v238 = vunpack.c.l.b16 %v135
    %v239 = vunpack.c.l.b16 %v136
    %v240 = vpack.c.b16 %v237, %v236
    %v241 = vpack.c.b16 %v239, %v238
    %v245 = vsel %vm41, %v226, 0
    %247 = vmatprep.subr.bf16.mxu0 0
    %248 = vmatpush1.bf16.msra.mxu0 0
    %249 = vmatprep.subr.bf16.mxu0 0
    %250 = vmatpush1.bf16.msra.mxu0 0
    %251 = vmatprep.subr.bf16.mxu0 0
    %252 = vmatpush1.bf16.msra.mxu0 0
    %253 = vmatprep.subr.bf16.mxu0 0
    %254 = vmatpush1.bf16.msra.mxu0 0
    %255 = vmatprep.subr.bf16.mxu0 0
    %256 = vmatpush1.bf16.msra.mxu0 0
    %257 = vmatprep.subr.bf16.mxu0 0
    %258 = vmatpush1.bf16.msra.mxu0 0
    %259 = vmatprep.subr.bf16.mxu0 0
    %260 = vmatpush1.bf16.msra.mxu0 %v241
    %261 = vmatprep.subr.bf16.mxu0 0
    %262 = vmatpush1.bf16.msra.mxu0 %v240
    %263 = vmatprep.subr.bf16.mxu0 0
    %264 = vmatpush2.bf16.msra.mxu0 0
    %265 = vmatprep.subr.bf16.mxu0 0
    %266 = vmatpush2.bf16.msra.mxu0 0
    %267 = vmatprep.subr.bf16.mxu0 0
    %268 = vmatpush2.bf16.msra.mxu0 0
    %269 = vmatprep.subr.bf16.mxu0 0
    %270 = vmatpush2.bf16.msra.mxu0 0
    %271 = vmatprep.subr.bf16.mxu0 0
    %272 = vmatpush2.bf16.msra.mxu0 0
    %273 = vmatprep.subr.bf16.mxu0 0
    %274 = vmatpush2.bf16.msra.mxu0 0
    %275 = vmatprep.subr.bf16.mxu0 0
    %276 = vmatpush2.bf16.msra.mxu0 0
    %277 = vmatprep.subr.bf16.mxu0 0
    %278 = vmatpush2.bf16.msra.mxu0 0
    %279 = vmatprep.mubr.bf16.mxu0 0
    %280 = vmatmul.mubr.bf16.gmra.mxu0 %v245
    %v281 = vpop.f32.mrf.mxu0
    %v282 = vadd.f32 %v231, %v281
    %v283 = vpop.f32.mrf.mxu0
    %v284 = vpop.f32.mrf.mxu0
    %v285 = vpop.f32.mrf.mxu0
    %286 = vdwg.mxu0
    %v287 = vmul.f32 %v282, 0.5
    %v288 = vmul.f32 %v282, 0.044715
    %v289 = vmul.f32 %v288, %v282
    %v290 = vmul.f32 %v289, %v282
    %v291 = vadd.f32 %v282, %v290
    %v292 = vmul.f32 %v291, 0.7978846
    %v293 = vtanh.pop %v292
    %v294 = vadd.f32 %v293, 1.0
    %v295 = vmul.f32 %v287, %v294
    %v296 = vpack.c.bf16 %v295, %v295
    %v297 = vld [vmem:[%s3 + $0x6] sm:$0x1]
    %v298 = vlaneseq
    %v299 = vshrl.u32 %v298, 7
    %v300 = vsub.s32 0, %v299
    %v301 = vrot.slane %v297, %v300
    %v318 = vunpack.c.l.b16 %v117
    %v319 = vunpack.c.l.b16 %v118
    %v320 = vunpack.c.l.b16 %v119
    %v321 = vunpack.c.l.b16 %v120
    %v322 = vunpack.c.l.b16 %v121
    %v323 = vunpack.c.l.b16 %v122
    %v324 = vunpack.c.l.b16 %v123
    %v325 = vunpack.c.l.b16 %v124
    %v326 = vunpack.c.l.b16 %v125
    %v327 = vunpack.c.l.b16 %v126
    %v328 = vunpack.c.l.b16 %v127
    %v329 = vunpack.c.l.b16 %v128
    %v330 = vunpack.c.l.b16 %v129
    %v331 = vunpack.c.l.b16 %v130
    %v332 = vunpack.c.l.b16 %v131
    %v333 = vunpack.c.l.b16 %v132
    %v334 = vpack.c.b16 %v319, %v318
    %v335 = vpack.c.b16 %v321, %v320
    %v336 = vpack.c.b16 %v323, %v322
    %v337 = vpack.c.b16 %v325, %v324
    %v338 = vpack.c.b16 %v327, %v326
    %v339 = vpack.c.b16 %v329, %v328
    %v340 = vpack.c.b16 %v331, %v330
    %v341 = vpack.c.b16 %v333, %v332
    %350 = vmatprep.subr.bf16.mxu0 0
    %351 = vmatpush1.bf16.msra.mxu0 %v341
    %352 = vmatprep.subr.bf16.mxu0 0
    %353 = vmatpush1.bf16.msra.mxu0 %v340
    %354 = vmatprep.subr.bf16.mxu0 0
    %355 = vmatpush1.bf16.msra.mxu0 %v339
    %356 = vmatprep.subr.bf16.mxu0 0
    %357 = vmatpush1.bf16.msra.mxu0 %v338
    %358 = vmatprep.subr.bf16.mxu0 0
    %359 = vmatpush1.bf16.msra.mxu0 %v337
    %360 = vmatprep.subr.bf16.mxu0 0
    %361 = vmatpush1.bf16.msra.mxu0 %v336
    %362 = vmatprep.subr.bf16.mxu0 0
    %363 = vmatpush1.bf16.msra.mxu0 %v335
    %364 = vmatprep.subr.bf16.mxu0 0
    %365 = vmatpush1.bf16.msra.mxu0 %v334
    %366 = vmatprep.subr.bf16.mxu0 0
    %367 = vmatpush2.bf16.msra.mxu0 0
    %368 = vmatprep.subr.bf16.mxu0 0
    %369 = vmatpush2.bf16.msra.mxu0 0
    %370 = vmatprep.subr.bf16.mxu0 0
    %371 = vmatpush2.bf16.msra.mxu0 0
    %372 = vmatprep.subr.bf16.mxu0 0
    %373 = vmatpush2.bf16.msra.mxu0 0
    %374 = vmatprep.subr.bf16.mxu0 0
    %375 = vmatpush2.bf16.msra.mxu0 0
    %376 = vmatprep.subr.bf16.mxu0 0
    %377 = vmatpush2.bf16.msra.mxu0 0
    %378 = vmatprep.subr.bf16.mxu0 0
    %379 = vmatpush2.bf16.msra.mxu0 0
    %380 = vmatprep.subr.bf16.mxu0 0
    %381 = vmatpush2.bf16.msra.mxu0 0
    %382 = vmatprep.mubr.bf16.mxu0 0
    %383 = vmatmul.mubr.bf16.gmra.mxu0 %v296
    %v384 = vpop.f32.mrf.mxu0
    %v385 = vadd.f32 %v301, %v384
    %v386 = vpop.f32.mrf.mxu0
    %v387 = vpop.f32.mrf.mxu0
    %v388 = vpop.f32.mrf.mxu0
    %389 = vdwg.mxu0
    %v390 = vadd.f32 %v385, %v225
    %v391 = vld [vmem:[%s3 + $0x7] sm:$0x1]
    %v392 = vld [vmem:[%s3 + $0x8] sm:$0x1]
    %v393 = vsel %vm41, %v390, 0.0
    %394 = vadd.xlane.f32.xlu0 %v393
    %v395 = vpop.xlane.xlu0 %394
    %v396 = vmul.f32 %v395, %v90
    %v397 = vmul.f32 %v390, %v390
    %v398 = vsel %vm41, %v397, 0.0
    %399 = vadd.xlane.f32.xlu0 %v398
    %v400 = vpop.xlane.xlu0 %399
    %v401 = vmul.f32 %v400, %v90
    %v402 = vmul.f32 %v396, %v396
    %v403 = vsub.f32 %v401, %v402
    %v404 = vsub.f32 %v390, %v396
    %v405 = vadd.f32 %v403, 1e-12
    %v406 = vrsqrt.pop %v405
    %v407 = vmul.f32 %v404, %v406
    %v408 = vlaneseq
    %v409 = vshrl.u32 %v408, 7
    %v410 = vsub.s32 0, %v409
    %v411 = vrot.slane %v391, %v410
    %v412 = vmul.f32 %v407, %v411
    %v413 = vlaneseq
    %v414 = vshrl.u32 %v413, 7
    %v415 = vsub.s32 0, %v414
    %v416 = vrot.slane %v392, %v415
    %v417 = vadd.f32 %v412, %v416
    %v418 = vld [vmem:[%s1 + $0x20] sm:$0xf]
    %v419 = vld [vmem:[%s1 + $0x24] sm:$0xf]
    %v420 = vld [vmem:[%s1 + $0x28] sm:$0xf]
    %v421 = vld [vmem:[%s1 + $0x2c] sm:$0xf]
    %v422 = vld [vmem:[%s1 + $0x70] sm:$0xf]
    %v423 = vld [vmem:[%s1 + $0x74] sm:$0xf]
    %v424 = vld [vmem:[%s1 + $0x78] sm:$0xf]
    %v425 = vld [vmem:[%s1 + $0x7c] sm:$0xf]
    %v426 = vld [vmem:[%s1 + $0x80] sm:$0xf]
    %v427 = vld [vmem:[%s1 + $0x84] sm:$0xf]
    %v428 = vld [vmem:[%s1 + $0x88] sm:$0xf]
    %v429 = vld [vmem:[%s1 + $0x8c] sm:$0xf]
    %v430 = vld [vmem:[%s1 + $0x90] sm:$0xf]
    %v431 = vld [vmem:[%s1 + $0x94] sm:$0xf]
    %v432 = vld [vmem:[%s1 + $0x98] sm:$0xf]
    %v433 = vld [vmem:[%s1 + $0x9c] sm:$0xf]
    %v434 = vld [vmem:[%s1 + $0xa0] sm:$0xf]
    %v435 = vld [vmem:[%s1 + $0xa4] sm:$0xf]
    %v436 = vld [vmem:[%s1 + $0xa8] sm:$0xf]
    %v437 = vld [vmem:[%s1 + $0xac] sm:$0xf]
    %v438 = vld [vmem:[%s2 + $0x10] sm:$0xf]
    %v439 = vld [vmem:[%s2 + $0x14] sm:$0xf]
    %v440 = vld [vmem:[%s2 + $0x18] sm:$0xf]
    %v441 = vld [vmem:[%s2 + $0x1c] sm:$0xf]
    %v442 = vpack.c.bf16 %v417, %v417
    %v443 = vld [vmem:[%s3 + $0x9] sm:$0x1]
    %v444 = vlaneseq
    %v445 = vshrl.u32 %v444, 7
    %v446 = vsub.s32 0, %v445
    %v447 = vrot.slane %v443, %v446
    %v452 = vunpack.c.l.b16 %v418
    %v453 = vunpack.c.l.b16 %v419
    %v454 = vunpack.c.l.b16 %v420
    %v455 = vunpack.c.l.b16 %v421
    %v456 = vpack.c.b16 %v453, %v452
    %v457 = vpack.c.b16 %v455, %v454
    %v461 = vsel %vm41, %v442, 0
    %463 = vmatprep.subr.bf16.mxu0 0
    %464 = vmatpush1.bf16.msra.mxu0 0
    %465 = vmatprep.subr.bf16.mxu0 0
    %466 = vmatpush1.bf16.msra.mxu0 0
    %467 = vmatprep.subr.bf16.mxu0 0
    %468 = vmatpush1.bf16.msra.mxu0 0
    %469 = vmatprep.subr.bf16.mxu0 0
    %470 = vmatpush1.bf16.msra.mxu0 0
    %471 = vmatprep.subr.bf16.mxu0 0
    %472 = vmatpush1.bf16.msra.mxu0 0
    %473 = vmatprep.subr.bf16.mxu0 0
    %474 = vmatpush1.bf16.msra.mxu0 0
    %475 = vmatprep.subr.bf16.mxu0 0
    %476 = vmatpush1.bf16.msra.mxu0 %v457
    %477 = vmatprep.subr.bf16.mxu0 0
    %478 = vmatpush1.bf16.msra.mxu0 %v456
    %479 = vmatprep.subr.bf16.mxu0 0
    %480 = vmatpush2.bf16.msra.mxu0 0
    %481 = vmatprep.subr.bf16.mxu0 0
    %482 = vmatpush2.bf16.msra.mxu0 0
    %483 = vmatprep.subr.bf16.mxu0 0
    %484 = vmatpush2.bf16.msra.mxu0 0
    %485 = vmatprep.subr.bf16.mxu0 0
    %486 = vmatpush2.bf16.msra.mxu0 0
    %487 = vmatprep.subr.bf16.mxu0 0
    %488 = vmatpush2.bf16.msra.mxu0 0
    %489 = vmatprep.subr.bf16.mxu0 0
    %490 = vmatpush2.bf16.msra.mxu0 0
    %491 = vmatprep.subr.bf16.mxu0 0
    %492 = vmatpush2.bf16.msra.mxu0 0
    %493 = vmatprep.subr.bf16.mxu0 0
    %494 = vmatpush2.bf16.msra.mxu0 0
    %495 = vmatprep.mubr.bf16.mxu0 0
    %496 = vmatmul.mubr.bf16.gmra.mxu0 %v461
    %v497 = vpop.f32.mrf.mxu0
    %v498 = vadd.f32 %v447, %v497
    %v499 = vpop.f32.mrf.mxu0
    %v500 = vpop.f32.mrf.mxu0
    %v501 = vpop.f32.mrf.mxu0
    %502 = vdwg.mxu0
    %v503 = vadd.f32 %v498, %v417
    %v504 = vld [vmem:[%s3 + $0xa] sm:$0x1]
    %v505 = vld [vmem:[%s3 + $0xb] sm:$0x1]
    %v506 = vsel %vm41, %v503, 0.0
    %507 = vadd.xlane.f32.xlu0 %v506
    %v508 = vpop.xlane.xlu0 %507
    %v509 = vmul.f32 %v508, %v90
    %v510 = vmul.f32 %v503, %v503
    %v511 = vsel %vm41, %v510, 0.0
    %512 = vadd.xlane.f32.xlu0 %v511
    %v513 = vpop.xlane.xlu0 %512
    %v514 = vmul.f32 %v513, %v90
    %v515 = vmul.f32 %v509, %v509
    %v516 = vsub.f32 %v514, %v515
    %v517 = vsub.f32 %v503, %v509
    %v518 = vadd.f32 %v516, 1e-12
    %v519 = vrsqrt.pop %v518
    %v520 = vmul.f32 %v517, %v519
    %v521 = vlaneseq
    %v522 = vshrl.u32 %v521, 7
    %v523 = vsub.s32 0, %v522
    %v524 = vrot.slane %v504, %v523
    %v525 = vmul.f32 %v520, %v524
    %v526 = vlaneseq
    %v527 = vshrl.u32 %v526, 7
    %v528 = vsub.s32 0, %v527
    %v529 = vrot.slane %v505, %v528
    %v530 = vadd.f32 %v525, %v529
    %v531 = vpack.c.bf16 %v530, %v530
    %v532 = vld [vmem:[%s3 + $0x10] sm:$0x1]
    %v533 = vlaneseq
    %v534 = vshrl.u32 %v533, 7
    %v535 = vsub.s32 0, %v534
    %v536 = vrot.slane %v532, %v535
    %v541 = vunpack.c.l.b16 %v438
    %v542 = vunpack.c.l.b16 %v439
    %v543 = vunpack.c.l.b16 %v440
    %v544 = vunpack.c.l.b16 %v441
    %v545 = vpack.c.b16 %v542, %v541
    %v546 = vpack.c.b16 %v544, %v543
    %v550 = vsel %vm41, %v531, 0
    %552 = vmatprep.subr.bf16.mxu0 0
    %553 = vmatpush1.bf16.msra.mxu0 0
    %554 = vmatprep.subr.bf16.mxu0 0
    %555 = vmatpush1.bf16.msra.mxu0 0
    %556 = vmatprep.subr.bf16.mxu0 0
    %557 = vmatpush1.bf16.msra.mxu0 0
    %558 = vmatprep.subr.bf16.mxu0 0
    %559 = vmatpush1.bf16.msra.mxu0 0
    %560 = vmatprep.subr.bf16.mxu0 0
    %561 = vmatpush1.bf16.msra.mxu0 0
    %562 = vmatprep.subr.bf16.mxu0 0
    %563 = vmatpush1.bf16.msra.mxu0 0
    %564 = vmatprep.subr.bf16.mxu0 0
    %565 = vmatpush1.bf16.msra.mxu0 %v546
    %566 = vmatprep.subr.bf16.mxu0 0
    %567 = vmatpush1.bf16.msra.mxu0 %v545
    %568 = vmatprep.subr.bf16.mxu0 0
    %569 = vmatpush2.bf16.msra.mxu0 0
    %570 = vmatprep.subr.bf16.mxu0 0
    %571 = vmatpush2.bf16.msra.mxu0 0
    %572 = vmatprep.subr.bf16.mxu0 0
    %573 = vmatpush2.bf16.msra.mxu0 0
    %574 = vmatprep.subr.bf16.mxu0 0
    %575 = vmatpush2.bf16.msra.mxu0 0
    %576 = vmatprep.subr.bf16.mxu0 0
    %577 = vmatpush2.bf16.msra.mxu0 0
    %578 = vmatprep.subr.bf16.mxu0 0
    %579 = vmatpush2.bf16.msra.mxu0 0
    %580 = vmatprep.subr.bf16.mxu0 0
    %581 = vmatpush2.bf16.msra.mxu0 0
    %582 = vmatprep.subr.bf16.mxu0 0
    %583 = vmatpush2.bf16.msra.mxu0 0
    %584 = vmatprep.mubr.bf16.mxu0 0
    %585 = vmatmul.mubr.bf16.gmra.mxu0 %v550
    %v586 = vpop.f32.mrf.mxu0
    %v587 = vadd.f32 %v536, %v586
    %v588 = vpop.f32.mrf.mxu0
    %v589 = vpop.f32.mrf.mxu0
    %v590 = vpop.f32.mrf.mxu0
    %591 = vdwg.mxu0
    %v592 = vmul.f32 %v587, 0.5
    %v593 = vmul.f32 %v587, 0.044715
    %v594 = vmul.f32 %v593, %v587
    %v595 = vmul.f32 %v594, %v587
    %v596 = vadd.f32 %v587, %v595
    %v597 = vmul.f32 %v596, 0.7978846
    %v598 = vtanh.pop %v597
    %v599 = vadd.f32 %v598, 1.0
    %v600 = vmul.f32 %v592, %v599
    %v601 = vpack.c.bf16 %v600, %v600
    %v602 = vld [vmem:[%s3 + $0xc] sm:$0x1]
    %v603 = vlaneseq
    %v604 = vshrl.u32 %v603, 7
    %v605 = vsub.s32 0, %v604
    %v606 = vrot.slane %v602, %v605
    %v623 = vunpack.c.l.b16 %v422
    %v624 = vunpack.c.l.b16 %v423
    %v625 = vunpack.c.l.b16 %v424
    %v626 = vunpack.c.l.b16 %v425
    %v627 = vunpack.c.l.b16 %v426
    %v628 = vunpack.c.l.b16 %v427
    %v629 = vunpack.c.l.b16 %v428
    %v630 = vunpack.c.l.b16 %v429
    %v631 = vunpack.c.l.b16 %v430
    %v632 = vunpack.c.l.b16 %v431
    %v633 = vunpack.c.l.b16 %v432
    %v634 = vunpack.c.l.b16 %v433
    %v635 = vunpack.c.l.b16 %v434
    %v636 = vunpack.c.l.b16 %v435
    %v637 = vunpack.c.l.b16 %v436
    %v638 = vunpack.c.l.b16 %v437
    %v639 = vpack.c.b16 %v624, %v623
    %v640 = vpack.c.b16 %v626, %v625
    %v641 = vpack.c.b16 %v628, %v627
    %v642 = vpack.c.b16 %v630, %v629
    %v643 = vpack.c.b16 %v632, %v631
    %v644 = vpack.c.b16 %v634, %v633
    %v645 = vpack.c.b16 %v636, %v635
    %v646 = vpack.c.b16 %v638, %v637
    %655 = vmatprep.subr.bf16.mxu0 0
    %656 = vmatpush1.bf16.msra.mxu0 %v646
    %657 = vmatprep.subr.bf16.mxu0 0
    %658 = vmatpush1.bf16.msra.mxu0 %v645
    %659 = vmatprep.subr.bf16.mxu0 0
    %660 = vmatpush1.bf16.msra.mxu0 %v644
    %661 = vmatprep.subr.bf16.mxu0 0
    %662 = vmatpush1.bf16.msra.mxu0 %v643
    %663 = vmatprep.subr.bf16.mxu0 0
    %664 = vmatpush1.bf16.msra.mxu0 %v642
    %665 = vmatprep.subr.bf16.mxu0 0
    %666 = vmatpush1.bf16.msra.mxu0 %v641
    %667 = vmatprep.subr.bf16.mxu0 0
    %668 = vmatpush1.bf16.msra.mxu0 %v640
    %669 = vmatprep.subr.bf16.mxu0 0
    %670 = vmatpush1.bf16.msra.mxu0 %v639
    %671 = vmatprep.subr.bf16.mxu0 0
    %672 = vmatpush2.bf16.msra.mxu0 0
    %673 = vmatprep.subr.bf16.mxu0 0
    %674 = vmatpush2.bf16.msra.mxu0 0
    %675 = vmatprep.subr.bf16.mxu0 0
    %676 = vmatpush2.bf16.msra.mxu0 0
    %677 = vmatprep.subr.bf16.mxu0 0
    %678 = vmatpush2.bf16.msra.mxu0 0
    %679 = vmatprep.subr.bf16.mxu0 0
    %680 = vmatpush2.bf16.msra.mxu0 0
    %681 = vmatprep.subr.bf16.mxu0 0
    %682 = vmatpush2.bf16.msra.mxu0 0
    %683 = vmatprep.subr.bf16.mxu0 0
    %684 = vmatpush2.bf16.msra.mxu0 0
    %685 = vmatprep.subr.bf16.mxu0 0
    %686 = vmatpush2.bf16.msra.mxu0 0
    %687 = vmatprep.mubr.bf16.mxu0 0
    %688 = vmatmul.mubr.bf16.gmra.mxu0 %v601
    %v689 = vpop.f32.mrf.mxu0
    %v690 = vadd.f32 %v606, %v689
    %v691 = vpop.f32.mrf.mxu0
    %v692 = vpop.f32.mrf.mxu0
    %v693 = vpop.f32.mrf.mxu0
    %694 = vdwg.mxu0
    %v695 = vadd.f32 %v690, %v530
    %v696 = vld [vmem:[%s3 + $0xd] sm:$0x1]
    %v697 = vld [vmem:[%s3 + $0xe] sm:$0x1]
    %v698 = vsel %vm41, %v695, 0.0
    %699 = vadd.xlane.f32.xlu0 %v698
    %v700 = vpop.xlane.xlu0 %699
    %v701 = vmul.f32 %v700, %v90
    %v702 = vmul.f32 %v695, %v695
    %v703 = vsel %vm41, %v702, 0.0
    %704 = vadd.xlane.f32.xlu0 %v703
    %v705 = vpop.xlane.xlu0 %704
    %v706 = vmul.f32 %v705, %v90
    %v707 = vmul.f32 %v701, %v701
    %v708 = vsub.f32 %v706, %v707
    %v709 = vsub.f32 %v695, %v701
    %v710 = vadd.f32 %v708, 1e-12
    %v711 = vrsqrt.pop %v710
    %v712 = vmul.f32 %v709, %v711
    %v713 = vlaneseq
    %v714 = vshrl.u32 %v713, 7
    %v715 = vsub.s32 0, %v714
    %v716 = vrot.slane %v696, %v715
    %v717 = vmul.f32 %v712, %v716
    %v718 = vlaneseq
    %v719 = vshrl.u32 %v718, 7
    %v720 = vsub.s32 0, %v719
    %v721 = vrot.slane %v697, %v720
    %v722 = vadd.f32 %v717, %v721
    %v723 = vpack.c.bf16 %v722, %v722
    %v724 = vld [vmem:[%s2 + $0x20] sm:$0xf]
    %v725 = vld [vmem:[%s2 + $0x24] sm:$0xf]
    %v726 = vld [vmem:[%s2 + $0x28] sm:$0xf]
    %v727 = vld [vmem:[%s2 + $0x2c] sm:$0xf]
    %v728 = vld [vmem:[%s3 + $0x11] sm:$0x1]
    %v729 = vlaneseq
    %v730 = vshrl.u32 %v729, 7
    %v731 = vsub.s32 0, %v730
    %v732 = vrot.slane %v728, %v731
    %v737 = vunpack.c.l.b16 %v724
    %v738 = vunpack.c.l.b16 %v725
    %v739 = vunpack.c.l.b16 %v726
    %v740 = vunpack.c.l.b16 %v727
    %v741 = vpack.c.b16 %v738, %v737
    %v742 = vpack.c.b16 %v740, %v739
    %v746 = vsel %vm41, %v723, 0
    %748 = vmatprep.subr.bf16.mxu0 0
    %749 = vmatpush1.bf16.msra.mxu0 0
    %750 = vmatprep.subr.bf16.mxu0 0
    %751 = vmatpush1.bf16.msra.mxu0 0
    %752 = vmatprep.subr.bf16.mxu0 0
    %753 = vmatpush1.bf16.msra.mxu0 0
    %754 = vmatprep.subr.bf16.mxu0 0
    %755 = vmatpush1.bf16.msra.mxu0 0
    %756 = vmatprep.subr.bf16.mxu0 0
    %757 = vmatpush1.bf16.msra.mxu0 0
    %758 = vmatprep.subr.bf16.mxu0 0
    %759 = vmatpush1.bf16.msra.mxu0 0
    %760 = vmatprep.subr.bf16.mxu0 0
    %761 = vmatpush1.bf16.msra.mxu0 %v742
    %762 = vmatprep.subr.bf16.mxu0 0
    %763 = vmatpush1.bf16.msra.mxu0 %v741
    %764 = vmatprep.subr.bf16.mxu0 0
    %765 = vmatpush2.bf16.msra.mxu0 0
    %766 = vmatprep.subr.bf16.mxu0 0
    %767 = vmatpush2.bf16.msra.mxu0 0
    %768 = vmatprep.subr.bf16.mxu0 0
    %769 = vmatpush2.bf16.msra.mxu0 0
    %770 = vmatprep.subr.bf16.mxu0 0
    %771 = vmatpush2.bf16.msra.mxu0 0
    %772 = vmatprep.subr.bf16.mxu0 0
    %773 = vmatpush2.bf16.msra.mxu0 0
    %774 = vmatprep.subr.bf16.mxu0 0
    %775 = vmatpush2.bf16.msra.mxu0 0
    %776 = vmatprep.subr.bf16.mxu0 0
    %777 = vmatpush2.bf16.msra.mxu0 0
    %778 = vmatprep.subr.bf16.mxu0 0
    %779 = vmatpush2.bf16.msra.mxu0 0
    %780 = vmatprep.mubr.bf16.mxu0 0
    %781 = vmatmul.mubr.bf16.gmra.mxu0 %v746
    %v782 = vpop.f32.mrf.mxu0
    %v783 = vadd.f32 %v732, %v782
    %v784 = vpop.f32.mrf.mxu0
    %v785 = vpop.f32.mrf.mxu0
    %v786 = vpop.f32.mrf.mxu0
    %787 = vdwg.mxu0
    %v788 = vxor.u32 %v783, 2147483648
    %v789 = vmul.f32 %v788, 1.442695
    %v790 = vpow.pop %v789
    %v791 = vadd.f32 %v790, 1.0
    %v792 = vrcp.pop %v791
    %v793 = vmul.f32 1.0, %v792
    %v794 = vpack.c.bf16 %v793, %v793
    %795 = vst [vmem:[#allocation2] sm:$0xf] %v794
    // Predicated region
    $region18: #{_forward_padded.1} parent=1 // pred_check
      _
    $region19: #{_forward_padded.1} parent=1 // pred_check_branch
      %797 = sbr.rel (0) target = $region21
    $region20: #{_forward_padded.1} parent=1 // pred_region
      %s799 = ssub.s32 64, 64
      %800 = vsyncadd [#allocation3], %s799
      %s802 = sshll.u32 [#allocation2], 4
      %s803 = int_to_ptr.vmem [resolvable:$true] %s802
      %805 = dma.vmem_to_hbm [thread:$0]  %s803, 64, %s4, [#allocation3]
    $region21: #{_forward_padded.1} parent=1 // pred_fallthru
      _
    // Predicated region
    $region22: #{_forward_padded.1} parent=1 // pred_check
      _
    $region23: #{_forward_padded.1} parent=1 // pred_check_branch
      %807 = sbr.rel (0) target = $region25
    $region24: #{_forward_padded.1} parent=1 // pred_region
      %808 = dma.done [#allocation3], 64
    $region25: #{_forward_padded.1} parent=1 // pred_fallthru
      _
    %809 = vsyncpa [#allocation3], 1

</llo_original>
